<compile_context>
chip_gen: v5e
topology: v5e:2x2
jax: 0.10.0
libtpu: 0.0.40
codegen_flags: <defaults>
</compile_context>

<pallas_src>
import functools
import math

import jax
import jax.numpy as jnp
import numpy as np
from jax import lax
from jax.experimental import pallas as pl
from jax.experimental.pallas import tpu as pltpu

# ---- module-level config that the PyTorch code reads from globals ----------
DEC_NUM_HEADS = 4
DEC_DIM_FEEDFORWARD = 256
DEC_DROPOUT = 0.1        # transformer-layer dropout: identity in eval mode
DEC_NUM_LAYERS = 2
DEC_ADD_POS = True
SX_ONE_HOT = False
ATTR_ONE_HOT = False
POS_DROPOUT = 0.1
POS_MAX_LEN = 64
LN_EPS = 1e-5            # nn.LayerNorm default
LEAKY_SLOPE = 0.01       # F.leaky_relu default negative_slope


# =============================================================================
# helpers
# =============================================================================
def _make_pe(emb_dim: int, max_len: int) -> jnp.ndarray:
    """Sinusoidal positional table, same math as the PyTorch PositionalEncoding."""
    pos = jnp.arange(max_len, dtype=jnp.float32)[:, None]                   # (L, 1)
    div = jnp.exp(jnp.arange(0, emb_dim, 2, dtype=jnp.float32)
                  * (-math.log(10000.0) / emb_dim))                         # (E/2,)
    pe = jnp.zeros((max_len, emb_dim), jnp.float32)
    pe = pe.at[:, 0::2].set(jnp.sin(pos * div))
    pe = pe.at[:, 1::2].set(jnp.cos(pos * div))
    return pe


def _full_block(shape):
    """BlockSpec covering the whole array (loaded into VMEM once per step)."""
    nd = len(shape)
    return pl.BlockSpec(tuple(int(d) for d in shape), lambda *_: (0,) * nd)


# =============================================================================
# kernel 1: embedding sum + positional encoding (+ dropout in training mode)
# =============================================================================
def _embed_pos_kernel(seed_ref, sx_ref, attr_ref, sx_emb_ref, attr_emb_ref,
                      pe_ref, o_ref, *, p, training):
    """One grid step = a lane-dense (tb*S, E) slab of rows in (batch, seq) order."""
    tn, emb = o_ref.shape
    s_len = pe_ref.shape[0]
    tb = tn // s_len                      # batch rows covered by this chunk
    n_sx = sx_emb_ref.shape[0]
    n_attr = attr_emb_ref.shape[0]

    # Embedding gathers expressed as one-hot MXU matmuls (no dynamic VMEM gather).
    sx_oh = (sx_ref[...] ==
             lax.broadcasted_iota(jnp.int32, (tn, n_sx), 1)).astype(jnp.float32)
    at_oh = (attr_ref[...] ==
             lax.broadcasted_iota(jnp.int32, (tn, n_attr), 1)).astype(jnp.float32)
    x = jnp.dot(sx_oh, sx_emb_ref[...], preferred_element_type=jnp.float32)
    x = x + jnp.dot(at_oh, attr_emb_ref[...], preferred_element_type=jnp.float32)

    # pe[:S] sits whole in VMEM; rows are in (batch, seq) order so the per-chunk
    # positional slab is the (S, E) table tiled `tb` times along sublanes.
    y = x + jnp.tile(pe_ref[...], (tb, 1))

    if training and p > 0.0:
        # nn.Dropout(p): zero with prob p, scale survivors by 1/(1-p).
        # Counter-based hash PRNG (pure VPU ops, works on any TPU gen and in
        # interpret mode).  uint32 threshold => no int32 overflow at p -> 1,
        # and only Python/numpy scalars are used (nothing captured as a traced
        # constant -- the bug in the previous version).
        keep_scale = 1.0 / (1.0 - p)
        thresh = np.uint32(min(int(p * 4294967296.0), 4294967295))
        row = lax.broadcasted_iota(jnp.int32, (tn, emb), 0)
        col = lax.broadcasted_iota(jnp.int32, (tn, emb), 1)
        idx = (pl.program_id(0) * tn + row) * emb + col        # global element id
        bits = (idx.astype(jnp.uint32)
                + seed_ref[0].astype(jnp.uint32) * np.uint32(0x9E3779B9))
        bits = bits ^ (bits >> np.uint32(16))                  # murmur3 fmix32
        bits = bits * np.uint32(0x85EBCA6B)
        bits = bits ^ (bits >> np.uint32(13))
        bits = bits * np.uint32(0xC2B2AE35)
        bits = bits ^ (bits >> np.uint32(16))
        y = jnp.where(bits >= thresh, y * keep_scale, 0.0)

    o_ref[...] = y.astype(o_ref.dtype)


def embed_pos_forward(sx_ids, attr_ids, sx_emb, attr_emb, pe, *,
                      p=POS_DROPOUT, training=False, seed=0):
    """sx_ids/attr_ids: (S, B) int.  Returns a lane-dense (B*S, E) f32 slab with
    rows in (batch, seq) order: emb_sum + pe[:S] (+ dropout in training mode)."""
    s_len, bsz = sx_ids.shape
    emb = sx_emb.shape[1]
    n = bsz * s_len

    # Grid coarsening (review): each step handles `tb` whole batch elements
    # (all S positions) == a multi-KiB..MiB slab, never one position per step.
    tb = bsz if bsz * s_len <= 4096 else max(1, 4096 // s_len)
    if bsz % tb or (tb != bsz and (tb * s_len) % 8):
        tb = bsz                          # keep blocks legal (full extent / 8-row aligned)
    tn = tb * s_len
    grid = (pl.cdiv(bsz, tb),)

    kernel = functools.partial(_embed_pos_kernel, p=float(p), training=bool(training))
    seed_arr = jnp.array([seed], dtype=jnp.int32)
    sx_flat = jnp.transpose(sx_ids).reshape(n, 1).astype(jnp.int32)
    attr_flat = jnp.transpose(attr_ids).reshape(n, 1).astype(jnp.int32)

    return pl.pallas_call(
        kernel,
        out_shape=jax.ShapeDtypeStruct((n, emb), jnp.float32),
        grid_spec=pltpu.PrefetchScalarGridSpec(
            num_scalar_prefetch=1,                               # dropout seed in SMEM
            grid=grid,
            in_specs=[
                pl.BlockSpec((tn, 1), lambda i, seed_ref: (i, 0)),   # sx id rows
                pl.BlockSpec((tn, 1), lambda i, seed_ref: (i, 0)),   # attr id rows
                _full_block(sx_emb.shape),                           # whole sx table
                _full_block(attr_emb.shape),                         # whole attr table
                _full_block((s_len, emb)),                           # pe[:S], untiled
            ],
            out_specs=pl.BlockSpec((tn, emb), lambda i, seed_ref: (i, 0)),
        ),
        compiler_params=pltpu.CompilerParams(
            dimension_semantics=("parallel",)),                  # v7x: both TensorCores
    )(seed_arr, sx_flat, attr_flat, sx_emb, attr_emb, pe[:s_len])


# =============================================================================
# kernel 2: one fused nn.TransformerEncoderLayer (post-LN, leaky_relu, eval mode)
# =============================================================================
def _layer_norm(x, w, b):
    mu = jnp.mean(x, axis=-1, keepdims=True)
    xc = x - mu
    var = jnp.mean(xc * xc, axis=-1, keepdims=True)
    return xc * lax.rsqrt(var + LN_EPS) * w + b


def _encoder_layer_kernel(x_ref, kpm_ref, wqkv_ref, bqkv_ref, wo_ref, bo_ref,
                          w1_ref, b1_ref, w2_ref, b2_ref,
                          ln1w_ref, ln1b_ref, ln2w_ref, ln2b_ref,
                          o_ref, *, num_heads):
    """Fused MHA + residual + LN + leaky_relu FFN + residual + LN.
    x rows are (batch, seq)-ordered, everything stays lane-dense (rows, E)."""
    n, emb = x_ref.shape
    bsz, s_len = kpm_ref.shape
    dh = emb // num_heads

    xf = x_ref[...].astype(jnp.float32)                             # (N, E)

    # --- multi-head self attention ------------------------------------------
    qkv = jnp.dot(xf, wqkv_ref[...], preferred_element_type=jnp.float32) + bqkv_ref[...]
    q = qkv[:, 0 * emb:1 * emb].reshape(bsz, s_len, emb)
    k = qkv[:, 1 * emb:2 * emb].reshape(bsz, s_len, emb)
    v = qkv[:, 2 * emb:3 * emb].reshape(bsz, s_len, emb)

    # key-padding mask (1 = padded key) -> additive bias on the key axis
    bias = kpm_ref[...].astype(jnp.float32) * (-1e30)               # (B, Sk)
    bias = bias[:, None, :]                                         # (B, 1, Sk)

    wo = wo_ref[...]                                                # (E, E) math layout
    scale = 1.0 / math.sqrt(dh)
    attn = jnp.zeros((n, emb), dtype=jnp.float32)
    for h in range(num_heads):                     # static loop, static lane slices
        sl = slice(h * dh, (h + 1) * dh)
        s = jnp.einsum('bqd,bkd->bqk', q[:, :, sl], k[:, :, sl],
                       preferred_element_type=jnp.float32) * scale + bias
        s = s - jnp.max(s, axis=-1, keepdims=True)                  # stable softmax
        pr = jnp.exp(s)
        pr = pr / jnp.sum(pr, axis=-1, keepdims=True)
        oh = jnp.einsum('bqk,bkd->bqd', pr, v[:, :, sl],
                        preferred_element_type=jnp.float32).reshape(n, dh)
        # out_proj(concat(heads)) == sum_h head_h @ Wo[h*dh:(h+1)*dh, :]
        attn = attn + jnp.dot(oh, wo[sl, :], preferred_element_type=jnp.float32)
    attn = attn + bo_ref[...]

    # --- residual + post-LN + feed-forward (dropout = identity in eval mode) --
    h1 = _layer_norm(xf + attn, ln1w_ref[...], ln1b_ref[...])
    f = jnp.dot(h1, w1_ref[...], preferred_element_type=jnp.float32) + b1_ref[...]
    f = jnp.where(f >= 0.0, f, LEAKY_SLOPE * f)                      # leaky_relu
    f = jnp.dot(f, w2_ref[...], preferred_element_type=jnp.float32) + b2_ref[...]
    h2 = _layer_norm(h1 + f, ln2w_ref[...], ln2b_ref[...])

    o_ref[...] = h2.astype(o_ref.dtype)


def encoder_layer_forward(x2d, kpm, lp):
    """x2d: (B*S, E) f32 rows in (batch, seq) order; kpm: (B, S) int32 (1 = pad)."""
    n, emb = x2d.shape
    row = lambda a: a.reshape(1, -1)
    # Torch stores Linear weights as (out, in); transpose once in the wrapper
    # (layout plumbing) so the kernel does plain (rows, in) @ (in, out) matmuls.
    args = (x2d, kpm,
            lp['in_w'].T,  row(lp['in_b']),        # (E, 3E), (1, 3E)
            lp['out_w'].T, row(lp['out_b']),       # (E, E),  (1, E)
            lp['w1'].T,    row(lp['b1']),          # (E, FF), (1, FF)
            lp['w2'].T,    row(lp['b2']),          # (FF, E), (1, E)
            row(lp['ln1_w']), row(lp['ln1_b']),
            row(lp['ln2_w']), row(lp['ln2_b']))
    return pl.pallas_call(
        functools.partial(_encoder_layer_kernel, num_heads=DEC_NUM_HEADS),
        out_shape=jax.ShapeDtypeStruct((n, emb), jnp.float32),
        grid=(1,),                    # whole (tiny) layer = one VMEM-resident fused step
        in_specs=[_full_block(a.shape) for a in args],
        out_specs=_full_block((n, emb)),
        compiler_params=pltpu.CompilerParams(dimension_semantics=("arbitrary",)),
    )(*args)


# =============================================================================
# SymptomDecoderXFMR.forward
# =============================================================================
def symptom_decoder_xfmr_forward(params, sx_ids, attr_ids, mask=None,
                                 src_key_padding_mask=None,
                                 training=False, seed=0):
    """Pallas forward of SymptomDecoderXFMR.forward.
    sx_ids/attr_ids: (S, B) int32.  src_key_padding_mask: (B, S) bool, True = pad.
    Returns (S, B, E) f32, matching the PyTorch (seq, batch, emb) layout."""
    if SX_ONE_HOT or ATTR_ONE_HOT:
        # TODO(synk): one-hot concat input path (sx_one_hot/attr_one_hot) not implemented.
        raise NotImplementedError("one-hot embedding concat path not implemented")
    if mask is not None:
        # TODO(synk): square attn_mask is unused by simulate/inference; not implemented.
        raise NotImplementedError("attn_mask not implemented")

    s_len, bsz = sx_ids.shape
    emb = params['sx_emb'].shape[1]

    pe = params['pe'] if DEC_ADD_POS else jnp.zeros_like(params['pe'])
    p_drop = POS_DROPOUT if DEC_ADD_POS else 0.0
    x = embed_pos_forward(sx_ids, attr_ids, params['sx_emb'], params['attr_emb'],
                          pe, p=p_drop, training=training, seed=seed)   # (B*S, E)

    if src_key_padding_mask is None:
        kpm = jnp.zeros((bsz, s_len), jnp.int32)
    else:
        kpm = src_key_padding_mask.astype(jnp.int32)

    # TODO(synk): transformer-layer dropout (dec_dropout) is eval-mode identity here.
    for lp in params['layers']:
        x = encoder_layer_forward(x, kpm, lp)

    return x.reshape(bsz, s_len, emb).transpose(1, 0, 2)               # (S, B, E)


def init_params(key, num_sxs, num_attrs, emb, ffn, num_layers):
    keys = iter(jax.random.split(key, 2 + 4 * num_layers))
    scale = 0.02
    params = {
        'sx_emb': scale * jax.random.normal(next(keys), (num_sxs, emb), jnp.float32),
        'attr_emb': scale * jax.random.normal(next(keys), (num_attrs, emb), jnp.float32),
        'pe': _make_pe(emb, POS_MAX_LEN),
        'layers': [],
    }
    for _ in range(num_layers):
        params['layers'].append({
            'in_w': scale * jax.random.normal(next(keys), (3 * emb, emb), jnp.float32),
            'in_b': jnp.zeros((3 * emb,), jnp.float32),
            'out_w': scale * jax.random.normal(next(keys), (emb, emb), jnp.float32),
            'out_b': jnp.zeros((emb,), jnp.float32),
            'w1': scale * jax.random.normal(next(keys), (ffn, emb), jnp.float32),
            'b1': jnp.zeros((ffn,), jnp.float32),
            'w2': scale * jax.random.normal(next(keys), (emb, ffn), jnp.float32),
            'b2': jnp.zeros((emb,), jnp.float32),
            'ln1_w': jnp.ones((emb,), jnp.float32),
            'ln1_b': jnp.zeros((emb,), jnp.float32),
            'ln2_w': jnp.ones((emb,), jnp.float32),
            'ln2_b': jnp.zeros((emb,), jnp.float32),
        })
    return params


# =============================================================================
# pure-JAX reference (for correctness checking only)
# =============================================================================
def _layer_norm_ref(x, w, b):
    mu = x.mean(-1, keepdims=True)
    var = ((x - mu) ** 2).mean(-1, keepdims=True)
    return (x - mu) / jnp.sqrt(var + LN_EPS) * w + b


def _encoder_layer_ref(x, lp, kpm):
    bsz, s_len, emb = x.shape
    hds, dh = DEC_NUM_HEADS, emb // DEC_NUM_HEADS
    qkv = x @ lp['in_w'].T + lp['in_b']
    q, k, v = jnp.split(qkv, 3, axis=-1)
    to_heads = lambda t: t.reshape(bsz, s_len, hds, dh).transpose(0, 2, 1, 3)
    q, k, v = to_heads(q), to_heads(k), to_heads(v)
    s = jnp.einsum('bhqd,bhkd->bhqk', q, k) / math.sqrt(dh)
    s = s + (kpm.astype(jnp.float32) * -1e30)[:, None, None, :]
    p = jax.nn.softmax(s, axis=-1)
    a = jnp.einsum('bhqk,bhkd->bhqd', p, v).transpose(0, 2, 1, 3).reshape(bsz, s_len, emb)
    a = a @ lp['out_w'].T + lp['out_b']
    h1 = _layer_norm_ref(x + a, lp['ln1_w'], lp['ln1_b'])
    f = h1 @ lp['w1'].T + lp['b1']
    f = jnp.where(f >= 0, f, LEAKY_SLOPE * f)
    f = f @ lp['w2'].T + lp['b2']
    return _layer_norm_ref(h1 + f, lp['ln2_w'], lp['ln2_b'])


def symptom_decoder_xfmr_ref(params, sx_ids, attr_ids, src_key_padding_mask=None):
    s_len, bsz = sx_ids.shape
    x = params['sx_emb'][sx_ids] + params['attr_emb'][attr_ids]         # (S, B, E)
    if DEC_ADD_POS:
        x = x + params['pe'][:s_len][:, None, :]
    x = x.transpose(1, 0, 2)                                            # (B, S, E)
    kpm = (jnp.zeros((bsz, s_len), jnp.int32) if src_key_padding_mask is None
           else src_key_padding_mask.astype(jnp.int32))
    for lp in params['layers']:
        x = _encoder_layer_ref(x, lp, kpm)
    return x.transpose(1, 0, 2)                                         # (S, B, E)


# =============================================================================
if __name__ == "__main__":
    S, B = 8, 2
    EMB, NUM_SXS, NUM_ATTRS = 128, 16, 6     # emb_dim = 128 keeps every store lane-dense

    key = jax.random.PRNGKey(0)
    k_par, k_sx, k_attr = jax.random.split(key, 3)
    params = init_params(k_par, NUM_SXS, NUM_ATTRS, EMB,
                         DEC_DIM_FEEDFORWARD, DEC_NUM_LAYERS)
    sx_ids = jax.random.randint(k_sx, (S, B), 0, NUM_SXS, dtype=jnp.int32)
    attr_ids = jax.random.randint(k_attr, (S, B), 0, NUM_ATTRS, dtype=jnp.int32)
    # PyTorch src_key_padding_mask convention: (B, S), True = padded key.
    kpm = jnp.zeros((B, S), jnp.bool_).at[1, S - 1].set(True)

    # --- eval-mode forward (the mode used by simulate/inference/generate) ----
    out = jax.block_until_ready(
        symptom_decoder_xfmr_forward(params, sx_ids, attr_ids,
                                     src_key_padding_mask=kpm, training=False))
    with jax.default_matmul_precision("highest"):
        ref = jax.block_until_ready(
            symptom_decoder_xfmr_ref(params, sx_ids, attr_ids,
                                     src_key_padding_mask=kpm))
    assert out.shape == (S, B, EMB) and out.dtype == jnp.float32
    assert bool(jnp.all(jnp.isfinite(out)))
    err = float(jnp.max(jnp.abs(out - ref)))
    # loose bound: MXU default-precision matmuls vs the f32 XLA reference
    assert err < 5e-2, f"forward mismatch vs pure-JAX reference: max|diff|={err}"

    # --- training-mode dropout smoke test on the embedding+positional kernel --
    emb_eval = embed_pos_forward(sx_ids, attr_ids, params['sx_emb'],
                                 params['attr_emb'], params['pe'], training=False)
    emb_train = jax.block_until_ready(
        embed_pos_forward(sx_ids, attr_ids, params['sx_emb'], params['attr_emb'],
                          params['pe'], training=True, seed=1234))
    surv = emb_train != 0.0
    assert bool(jnp.allclose(jnp.where(surv, emb_train, 0.0),
                             jnp.where(surv, emb_eval / (1.0 - POS_DROPOUT), 0.0),
                             atol=1e-3, rtol=1e-3)), "dropout survivors not rescaled"
    drop_frac = 1.0 - float(jnp.mean(surv.astype(jnp.float32)))
    assert 0.02 < drop_frac < 0.30, f"unexpected dropout rate {drop_frac}"

    print("KERNEL_OK")
</pallas_src>

<mosaic_0001>
module attributes {stable_mosaic.version = 11 : i64} {
  func.func @_embed_pos_kernel(%arg0: i32, %arg1: memref<1xi32, #tpu.memory_space<smem>>, %arg2: memref<16x1xi32, #tpu.memory_space<vmem>>, %arg3: memref<16x1xi32, #tpu.memory_space<vmem>>, %arg4: memref<16x128xf32, #tpu.memory_space<vmem>>, %arg5: memref<6x128xf32, #tpu.memory_space<vmem>>, %arg6: memref<8x128xf32, #tpu.memory_space<vmem>>, %arg7: memref<16x128xf32, #tpu.memory_space<vmem>>) attributes {dimension_semantics = [#tpu.dimension_semantics<parallel>], iteration_bounds = array<i64: 1>, scalar_prefetch = 1 : i64, scratch_operands = 0 : i64, tpu.core_type = #tpu.core_type<tc>, window_params = [{transform_indices = @transform_0, window_bounds = array<i64: 16, 1>}, {transform_indices = @transform_1, window_bounds = array<i64: 16, 1>}, {pipeline_mode = #tpu.pipeline_mode<synchronous>, transform_indices = @transform_2, window_bounds = array<i64: 16, 128>}, {pipeline_mode = #tpu.pipeline_mode<synchronous>, transform_indices = @transform_3, window_bounds = array<i64: 6, 128>}, {pipeline_mode = #tpu.pipeline_mode<synchronous>, transform_indices = @transform_4, window_bounds = array<i64: 8, 128>}, {transform_indices = @transform_5, window_bounds = array<i64: 16, 128>}]} {
    %c0 = arith.constant 0 : index
    %c0_0 = arith.constant 0 : index
    %0 = vector.load %arg2[%c0, %c0_0] : memref<16x1xi32, #tpu.memory_space<vmem>>, vector<16x1xi32>
    %1 = tpu.iota {dimensions = array<i32: 1>} : vector<16x16xi32>
    %2 = vector.broadcast %0 : vector<16x1xi32> to vector<16x16xi32>
    %3 = arith.cmpi eq, %2, %1 : vector<16x16xi32>
    %4 = arith.extui %3 : vector<16x16xi1> to vector<16x16xi32>
    %5 = arith.sitofp %4 : vector<16x16xi32> to vector<16x16xf32>
    %c0_1 = arith.constant 0 : index
    %c0_2 = arith.constant 0 : index
    %6 = vector.load %arg3[%c0_1, %c0_2] : memref<16x1xi32, #tpu.memory_space<vmem>>, vector<16x1xi32>
    %7 = tpu.iota {dimensions = array<i32: 1>} : vector<16x6xi32>
    %8 = vector.broadcast %6 : vector<16x1xi32> to vector<16x6xi32>
    %9 = arith.cmpi eq, %8, %7 : vector<16x6xi32>
    %10 = arith.extui %9 : vector<16x6xi1> to vector<16x6xi32>
    %11 = arith.sitofp %10 : vector<16x6xi32> to vector<16x6xf32>
    %c0_3 = arith.constant 0 : index
    %c0_4 = arith.constant 0 : index
    %12 = vector.load %arg4[%c0_3, %c0_4] : memref<16x128xf32, #tpu.memory_space<vmem>>, vector<16x128xf32>
    %cst = arith.constant dense<0.000000e+00> : vector<16x128xf32>
    %13 = tpu.matmul %5, %12, %cst {dimension_numbers = #tpu.dot_dimension_numbers<[1], [0], [0], [1], [0, 0, 1, 1], [], []>} : vector<16x16xf32>, vector<16x128xf32>, vector<16x128xf32> -> vector<16x128xf32>
    %c0_5 = arith.constant 0 : index
    %c0_6 = arith.constant 0 : index
    %14 = vector.load %arg5[%c0_5, %c0_6] : memref<6x128xf32, #tpu.memory_space<vmem>>, vector<6x128xf32>
    %cst_7 = arith.constant dense<0.000000e+00> : vector<16x128xf32>
    %15 = tpu.matmul %11, %14, %cst_7 {dimension_numbers = #tpu.dot_dimension_numbers<[1], [0], [0], [1], [0, 0, 1, 1], [], []>} : vector<16x6xf32>, vector<6x128xf32>, vector<16x128xf32> -> vector<16x128xf32>
    %16 = arith.addf %13, %15 : vector<16x128xf32>
    %c0_8 = arith.constant 0 : index
    %c0_9 = arith.constant 0 : index
    %17 = vector.load %arg6[%c0_8, %c0_9] : memref<8x128xf32, #tpu.memory_space<vmem>>, vector<8x128xf32>
    %18 = tpu.concatenate %17, %17 in 0 : vector<8x128xf32>, vector<8x128xf32> -> vector<16x128xf32>
    %19 = arith.addf %16, %18 : vector<16x128xf32>
    %c0_10 = arith.constant 0 : index
    %c0_11 = arith.constant 0 : index
    %20 = vector.load %arg7[%c0_10, %c0_11] : memref<16x128xf32, #tpu.memory_space<vmem>>, vector<16x128xf32>
    tpu.vector_store %arg7[%c0_10, %c0_11], %19 {strides = array<i32>} : memref<16x128xf32, #tpu.memory_space<vmem>>, vector<16x128xf32>,
    return
  }
  func.func @transform_0(%arg0: i32, %arg1: memref<1xi32, #tpu.memory_space<smem>>) -> (i32, i32) {
    %c0_i32 = arith.constant 0 : i32
    %c0_i32_0 = arith.constant 0 : i32
    return %arg0, %c0_i32 : i32, i32
  }
  func.func @transform_1(%arg0: i32, %arg1: memref<1xi32, #tpu.memory_space<smem>>) -> (i32, i32) {
    %c0_i32 = arith.constant 0 : i32
    %c0_i32_0 = arith.constant 0 : i32
    return %arg0, %c0_i32 : i32, i32
  }
  func.func @transform_2(%arg0: i32, %arg1: memref<1xi32, #tpu.memory_space<smem>>) -> (i32, i32) {
    %c0_i32 = arith.constant 0 : i32
    %c0_i32_0 = arith.constant 0 : i32
    %c0_i32_1 = arith.constant 0 : i32
    return %c0_i32, %c0_i32_0 : i32, i32
  }
  func.func @transform_3(%arg0: i32, %arg1: memref<1xi32, #tpu.memory_space<smem>>) -> (i32, i32) {
    %c0_i32 = arith.constant 0 : i32
    %c0_i32_0 = arith.constant 0 : i32
    %c0_i32_1 = arith.constant 0 : i32
    return %c0_i32, %c0_i32_0 : i32, i32
  }
  func.func @transform_4(%arg0: i32, %arg1: memref<1xi32, #tpu.memory_space<smem>>) -> (i32, i32) {
    %c0_i32 = arith.constant 0 : i32
    %c0_i32_0 = arith.constant 0 : i32
    %c0_i32_1 = arith.constant 0 : i32
    return %c0_i32, %c0_i32_0 : i32, i32
  }
  func.func @transform_5(%arg0: i32, %arg1: memref<1xi32, #tpu.memory_space<smem>>) -> (i32, i32) {
    %c0_i32 = arith.constant 0 : i32
    %c0_i32_0 = arith.constant 0 : i32
    return %arg0, %c0_i32 : i32, i32
  }
}

</mosaic_0001>

<llo_original>
// kernel: tpu_custom_call.1
$region0: #{tpu_custom_call.1}
  #allocation0 [shape = 'u32[]', space=smem, size = 0x4, offset = 0x4, fixed_abs, tag = 'smem constant byte address 0x4 - core index']
  #allocation1 [shape = 'u32[72,128]{1,0:T(1,128)}', space=vmem, size = 0x9000, scoped, tag = 'internal scratch']
  #allocation2 [shape = 's32[1]{0}', space=sflag, size = 0x4, scoped, tag = 'scoped memory for tpu_custom_call.1']
  #allocation3 [shape = 's32[1]{0:T(128)S(6)}', space=smem, size = 0x200, scoped, tag = 'prefetched SMEM operand 0']
  %s0 = inlined_call_operand.<no memory space> [shape: s32[1], index: 0, kind: input, shape index: {}]
  %s1 = inlined_call_operand.vmem [shape: s32[16,1], index: 1, kind: input, shape index: {}]
  %s2 = inlined_call_operand.vmem [shape: s32[16,1], index: 2, kind: input, shape index: {}]
  %s3 = inlined_call_operand.vmem [shape: f32[16,128], index: 3, kind: input, shape index: {}]
  %s4 = inlined_call_operand.vmem [shape: f32[6,128], index: 4, kind: input, shape index: {}]
  %s5 = inlined_call_operand.vmem [shape: f32[8,128], index: 5, kind: input, shape index: {}]
  %s6 = inlined_call_operand.hbm [shape: f32[16,128], index: 6, kind: output, shape index: {}]
  %s7 = sld [smem:[#allocation0]]
  $region30: #{tpu_custom_call.1} parent=0
    _
  %s9 = ssub.s32 1, %s7
  %s10 = scalar_select 0, %s9, %s7
  %11 = sst [smem:[#allocation3]] %s0
  $region1: #{tpu_custom_call.1} parent=0
    #allocation4 [shape = 'u8[8192]{0}', space=vmem, size = 0x2000, scoped, tag = 'output window, operand 0, single buffered']
    #allocation5 [shape = 's32[1]{0}', space=sflag, size = 0x4, scoped, tag = 'scoped memory for tpu_custom_call.1']
    %12 = vsyncpa [#allocation5], 0
    // Predicated region
    $region2: #{tpu_custom_call.1} parent=1 // pred_check
      _
    $region3: #{tpu_custom_call.1} parent=1 // pred_check_branch
      %14 = sbr.rel (0) target = $region5
    $region4: #{tpu_custom_call.1} parent=1 // pred_region
      _
    $region5: #{tpu_custom_call.1} parent=1 // pred_fallthru
      _
    // Predicated region
    $region6: #{tpu_custom_call.1} parent=1 // pred_check
      _
    $region7: #{tpu_custom_call.1} parent=1 // pred_check_branch
      %16 = sbr.rel (0) target = $region9
    $region8: #{tpu_custom_call.1} parent=1 // pred_region
      _
    $region9: #{tpu_custom_call.1} parent=1 // pred_fallthru
      _
    // Predicated region
    $region10: #{tpu_custom_call.1} parent=1 // pred_check
      _
    $region11: #{tpu_custom_call.1} parent=1 // pred_check_branch
      %18 = sbr.rel (0) target = $region13
    $region12: #{tpu_custom_call.1} parent=1 // pred_region
      _
    $region13: #{tpu_custom_call.1} parent=1 // pred_fallthru
      _
    // Predicated region
    $region14: #{tpu_custom_call.1} parent=1 // pred_check
      _
    $region15: #{tpu_custom_call.1} parent=1 // pred_check_branch
      %20 = sbr.rel (0) target = $region17
    $region16: #{tpu_custom_call.1} parent=1 // pred_region
      _
    $region17: #{tpu_custom_call.1} parent=1 // pred_fallthru
      _
    // Predicated region
    $region18: #{tpu_custom_call.1} parent=1 // pred_check
      _
    $region19: #{tpu_custom_call.1} parent=1 // pred_check_branch
      %22 = sbr.rel (0) target = $region21
    $region20: #{tpu_custom_call.1} parent=1 // pred_region
      _
    $region21: #{tpu_custom_call.1} parent=1 // pred_fallthru
      _
    %v23 = vld [vmem:[%s1] sm:$0xff]
    %v24 = vld [vmem:[%s1 + $0x8] sm:$0xff]
    %v25 = vlaneseq
    %v26 = vand.u32 %v25, 127
    %27 = vset.pattern.permute.xlu0 0
    %28 = vperm.xlu0 %27, %v23
    %v29 = vpop.permute.xlu0 %28
    %30 = vset.pattern.permute.xlu0 0
    %31 = vperm.xlu0 %30, %v24
    %v32 = vpop.permute.xlu0 %31
    %vm33 = vcmp.eq.s32.totalorder %v29, %v26
    %vm34 = vcmp.eq.s32.totalorder %v32, %v26
    %v35 = vsel %vm33, 1, 0
    %v36 = vsel %vm34, 1, 0
    %v37 = vcvt.s32.f32 %v35
    %v38 = vcvt.s32.f32 %v36
    %v39 = vld [vmem:[%s2] sm:$0xff]
    %v40 = vld [vmem:[%s2 + $0x8] sm:$0xff]
    %41 = vset.pattern.permute.xlu0 0
    %42 = vperm.xlu0 %41, %v39
    %v43 = vpop.permute.xlu0 %42
    %44 = vset.pattern.permute.xlu0 0
    %45 = vperm.xlu0 %44, %v40
    %v46 = vpop.permute.xlu0 %45
    %vm47 = vcmp.eq.s32.totalorder %v43, %v26
    %vm48 = vcmp.eq.s32.totalorder %v46, %v26
    %v49 = vsel %vm47, 1, 0
    %v50 = vsel %vm48, 1, 0
    %v51 = vcvt.s32.f32 %v49
    %v52 = vcvt.s32.f32 %v50
    %v53 = vld [vmem:[%s3] sm:$0xff]
    %v54 = vld [vmem:[%s3 + $0x8] sm:$0xff]
    %v55 = vld [vmem:[%s4] sm:$0x3f]
    %vm56 = vcmask 48128
    %v58 = vsel %vm56, %v51, 0
    %v61 = vsel %vm56, %v52, 0
    %vm63 = vcmask 1045504
    %v65 = vsel %vm63, %v55, 0
    %67 = vmatpush.msra.mxu0 0.0
    %68 = vmatpush.msra.mxu0 0.0
    %69 = vmatpush.msra.mxu0 0.0
    %70 = vmatpush.msra.mxu0 0.0
    %71 = vmatpush.msra.mxu0 0.0
    %72 = vmatpush.msra.mxu0 0.0
    %73 = vmatpush.msra.mxu0 0.0
    %74 = vmatpush.msra.mxu0 0.0
    %75 = vmatpush.msra.mxu0 0.0
    %76 = vmatpush.msra.mxu0 0.0
    %77 = vmatpush.msra.mxu0 0.0
    %78 = vmatpush.msra.mxu0 0.0
    %79 = vmatpush.msra.mxu0 0.0
    %80 = vmatpush.msra.mxu0 0.0
    %81 = vmatpush.msra.mxu0 0.0
    %82 = vmatpush.msra.mxu0 %v65
    %83 = vmatmul.f32.gmra.mxu0 %v58
    %v84 = vpop.f32.mrf.mxu0
    %v85 = vadd.f32 0.0, %v84
    %86 = vmatmul.f32.gmra.mxu0 %v61
    %v87 = vpop.f32.mrf.mxu0
    %v88 = vadd.f32 0.0, %v87
    %89 = vdwg.mxu0
    %vm90 = vcmask 130048
    %v92 = vsel %vm90, %v37, 0
    %v95 = vsel %vm90, %v38, 0
    %97 = vmatpush.msra.mxu0 0.0
    %98 = vmatpush.msra.mxu0 0.0
    %99 = vmatpush.msra.mxu0 0.0
    %100 = vmatpush.msra.mxu0 0.0
    %101 = vmatpush.msra.mxu0 0.0
    %102 = vmatpush.msra.mxu0 0.0
    %103 = vmatpush.msra.mxu0 0.0
    %104 = vmatpush.msra.mxu0 0.0
    %105 = vmatpush.msra.mxu0 0.0
    %106 = vmatpush.msra.mxu0 0.0
    %107 = vmatpush.msra.mxu0 0.0
    %108 = vmatpush.msra.mxu0 0.0
    %109 = vmatpush.msra.mxu0 0.0
    %110 = vmatpush.msra.mxu0 0.0
    %111 = vmatpush.msra.mxu0 %v54
    %112 = vmatpush.msra.mxu0 %v53
    %113 = vmatmul.f32.gmra.mxu0 %v92
    %v114 = vpop.f32.mrf.mxu0
    %v115 = vadd.f32 %v85, %v114
    %116 = vmatmul.f32.gmra.mxu0 %v95
    %v117 = vpop.f32.mrf.mxu0
    %v118 = vadd.f32 %v88, %v117
    %119 = vdwg.mxu0
    %v120 = vld [vmem:[%s5] sm:$0xff]
    %v121 = vadd.f32 %v115, %v120
    %v122 = vadd.f32 %v118, %v120
    %123 = vst [vmem:[#allocation4] sm:$0xff] %v121
    %124 = vst [vmem:[#allocation4 + $0x8] sm:$0xff] %v122
    // Predicated region
    $region22: #{tpu_custom_call.1} parent=1 // pred_check
      _
    $region23: #{tpu_custom_call.1} parent=1 // pred_check_branch
      %126 = sbr.rel (0) target = $region25
    $region24: #{tpu_custom_call.1} parent=1 // pred_region
      %128 = vsyncadd [#allocation5], 0
      %s129 = sshll.u32 [#allocation4], 4
      %s130 = int_to_ptr.vmem [resolvable:$true] %s129
      %s131 = sshll.u32 %s6, 4
      %s132 = int_to_ptr.hbm [resolvable:$true] %s131
      %137 = dma.vmem_to_hbm [thread:$0]  %s130, 256, %s132, [#allocation5], 128, 128, 8
    $region25: #{tpu_custom_call.1} parent=1 // pred_fallthru
      _
    // Predicated region
    $region26: #{tpu_custom_call.1} parent=1 // pred_check
      _
    $region27: #{tpu_custom_call.1} parent=1 // pred_check_branch
      %139 = sbr.rel (0) target = $region29
    $region28: #{tpu_custom_call.1} parent=1 // pred_region
      %141 = dma.done [#allocation5], 256
    $region29: #{tpu_custom_call.1} parent=1 // pred_fallthru
      _
    %142 = vsyncpa [#allocation5], 1

</llo_original>
